<compile_context>
chip_gen: v5e
topology: v5e:2x2
jax: 0.10.0
libtpu: 0.0.40
codegen_flags: <defaults>
</compile_context>

<pallas_src>
import functools

import jax
import jax.numpy as jnp
from jax.experimental import pallas as pl
from jax.experimental.pallas import tpu as pltpu

FP = 128  # lane-dense feature slab width: action lanes [0, A), state lanes [A, A+S)
HP = 128  # lane-dense hidden width


def _round_up(x, m):
    return ((x + m - 1) // m) * m


def _inverse_net_kernel(slab_ref, w1_ref, b1_ref, w2_ref, b2_ref, out_ref,
                        *, num_blocks, action_dim, dt):
    """Block chain + single Euler step for one batch tile (everything lane-padded to 128)."""
    slab = slab_ref[...].astype(jnp.float32)           # [bt, 128] fused action|state slab
    lane = jax.lax.broadcasted_iota(jnp.int32, slab.shape, 1)
    is_action = lane < action_dim
    a0 = jnp.where(is_action, slab, 0.0)                # action in lanes [0, A), zero elsewhere
    s_slab = jnp.where(is_action, 0.0, slab)            # state in lanes [A, A+S), zero elsewhere

    wdt = w1_ref.dtype                                   # f32 or bf16 storage; accumulate in f32
    a = a0
    # Static unroll over the (small) number of inverse blocks.
    for blk in range(num_blocks):
        # Fused layer-1 input: lanes [A, 128) of `a` are exactly zero because the
        # pad columns of W2/b2 are zero, so `a + s_slab` is the lane-packed concat.
        x = (a + s_slab).astype(wdt)
        h = jnp.tanh(
            jnp.dot(x, w1_ref[blk], preferred_element_type=jnp.float32)
            + b1_ref[blk]                                # [1, 128] f32, broadcasts over batch
        )
        a = jnp.dot(h.astype(wdt), w2_ref[blk], preferred_element_type=jnp.float32) + b2_ref[blk]

    # odeint(..., times=[0, 1], method='euler')[1]  ==  y0 + dt * f(t0, y0), dt = 1
    if dt == 1.0:
        out = a0 + a
    else:
        out = a0 + dt * a
    out_ref[...] = out.astype(out_ref.dtype)


def pack_params(params, *, storage_dtype=jnp.float32):
    """Pad/fuse block parameters ONCE (outside the hot path).

    W1a (action rows) and W1s (state rows) are stacked into one [128, 128]
    first-layer matrix so the two first-layer matmuls fuse into a single MXU
    push per block. All pad rows/columns are exactly zero (required for the
    lane-packed concat trick to stay exact)."""
    w1a, w1s, b1, w2, b2 = params
    num_blocks, A, H = w1a.shape
    S = w1s.shape[1]
    assert A + S <= FP and H <= HP, "kernel assumes action+state and hidden fit in 128 lanes"

    w1 = jnp.zeros((num_blocks, FP, HP), storage_dtype)
    w1 = w1.at[:, :A, :H].set(w1a.astype(storage_dtype))           # action rows
    w1 = w1.at[:, A:A + S, :H].set(w1s.astype(storage_dtype))      # state rows (fused layer 1)
    b1p = jnp.zeros((num_blocks, 1, HP), jnp.float32).at[:, :, :H].set(b1.astype(jnp.float32))
    w2p = jnp.zeros((num_blocks, HP, FP), storage_dtype).at[:, :H, :A].set(w2.astype(storage_dtype))
    b2p = jnp.zeros((num_blocks, 1, FP), jnp.float32).at[:, :, :A].set(b2.astype(jnp.float32))
    return {
        "w1": w1, "b1": b1p, "w2": w2p, "b2": b2p,
        "num_blocks": num_blocks, "action_dim": A, "state_dim": S, "hidden": H,
        "storage_dtype": storage_dtype,
    }


def inverse_net_forward(state, action, packed, *, dt=1.0, batch_tile=512):
    """Pallas wrapper. state: [B, S], action: [B, A] -> [B, A]."""
    A = packed["action_dim"]
    S = packed["state_dim"]
    num_blocks = packed["num_blocks"]
    sdt = packed["storage_dtype"]
    B = action.shape[0]
    assert state.shape[0] == B and state.shape[1] == S and action.shape[1] == A

    # Batch tiling: sublane-multiple tiles, >=2 grid steps for v7x dual-TC when
    # the batch is big enough, 512-row tiles (sweepable) once the batch exceeds it.
    batch_tile = max(8, _round_up(batch_tile, 8))
    rounded = _round_up(B, 8)
    if rounded > batch_tile:
        bt = batch_tile
    elif rounded >= 256:
        bt = _round_up((B + 1) // 2, 8)   # split so dimension_semantics=("parallel",) can use 2 TCs
    else:
        bt = rounded                      # tiny batch: single grid step, no extra overhead
    BP = _round_up(B, bt)
    grid = (BP // bt,)

    # ONE fused input slab: action in lanes [0, A), state in lanes [A, A+S), zero elsewhere.
    slab = jnp.zeros((BP, FP), sdt)
    slab = slab.at[:B, :A].set(action.astype(sdt))
    slab = slab.at[:B, A:A + S].set(state.astype(sdt))

    kernel = functools.partial(_inverse_net_kernel,
                               num_blocks=num_blocks, action_dim=A, dt=dt)

    itemsize = jnp.dtype(sdt).itemsize
    param_bytes = (packed["w1"].size + packed["w2"].size) * itemsize \
        + (packed["b1"].size + packed["b2"].size) * 4
    act_bytes = 2 * BP * FP * itemsize                 # slab in + aliased 128-lane out
    cost = pl.CostEstimate(
        flops=4 * BP * num_blocks * FP * HP,           # two [*,128]x[128,128] matmuls per block
        transcendentals=BP * HP * num_blocks,          # tanh
        bytes_accessed=param_bytes + act_bytes,
    )

    out_pad = pl.pallas_call(
        kernel,
        out_shape=jax.ShapeDtypeStruct((BP, FP), sdt),
        grid=grid,
        in_specs=[
            pl.BlockSpec((bt, FP), lambda i: (i, 0)),                    # fused action|state slab
            pl.BlockSpec((num_blocks, FP, HP), lambda i: (0, 0, 0)),     # fused W1 (constant index)
            pl.BlockSpec((num_blocks, 1, HP), lambda i: (0, 0, 0)),      # b1
            pl.BlockSpec((num_blocks, HP, FP), lambda i: (0, 0, 0)),     # W2
            pl.BlockSpec((num_blocks, 1, FP), lambda i: (0, 0, 0)),      # b2
        ],
        out_specs=pl.BlockSpec((bt, FP), lambda i: (i, 0)),              # lane-dense 128-wide output
        input_output_aliases={0: 0},   # reuse the slab buffer as the output
        compiler_params=pltpu.CompilerParams(
            dimension_semantics=("parallel",),
        ),
        cost_estimate=cost,
    )(slab, packed["w1"], packed["b1"], packed["w2"], packed["b2"])

    return out_pad[:B, :A].astype(action.dtype)


def make_params(key, num_blocks, action_dim, state_dim, hidden):
    """Deterministic synthetic parameters for the inverse blocks."""
    ks = jax.random.split(key, 5)
    scale = 0.1
    w1a = scale * jax.random.normal(ks[0], (num_blocks, action_dim, hidden), jnp.float32)
    w1s = scale * jax.random.normal(ks[1], (num_blocks, state_dim, hidden), jnp.float32)
    b1 = scale * jax.random.normal(ks[2], (num_blocks, 1, hidden), jnp.float32)
    w2 = scale * jax.random.normal(ks[3], (num_blocks, hidden, action_dim), jnp.float32)
    b2 = scale * jax.random.normal(ks[4], (num_blocks, 1, action_dim), jnp.float32)
    return (w1a, w1s, b1, w2, b2)


def reference_forward(state, action, params, dt=1.0):
    """Pure-JAX reference of the same semantics (block chain + one Euler step)."""
    w1a, w1s, b1, w2, b2 = params
    a = action
    for blk in range(w1a.shape[0]):
        h = jnp.tanh(a @ w1a[blk] + state @ w1s[blk] + b1[blk])
        a = h @ w2[blk] + b2[blk]
    return action + dt * a


if __name__ == "__main__":
    NUM_BLOCKS = 2
    BATCH = 8
    ACTION_DIM = 8
    STATE_DIM = 16
    HIDDEN = 32

    key = jax.random.PRNGKey(0)
    k_state, k_action, k_params = jax.random.split(key, 3)

    state = jax.random.normal(k_state, (BATCH, STATE_DIM), jnp.float32)
    action = jax.random.normal(k_action, (BATCH, ACTION_DIM), jnp.float32)
    params = make_params(k_params, NUM_BLOCKS, ACTION_DIM, STATE_DIM, HIDDEN)
    ref = reference_forward(state, action, params, dt=1.0)

    # f32 path (default; v5e recommendation): tight tolerance vs. pure-JAX reference.
    packed_f32 = pack_params(params, storage_dtype=jnp.float32)
    fwd = jax.jit(lambda st, ac: inverse_net_forward(st, ac, packed_f32, dt=1.0))
    out = jax.block_until_ready(fwd(state, action))
    assert out.shape == (BATCH, ACTION_DIM)
    assert jnp.allclose(out, ref, atol=1e-5, rtol=1e-5)

    # bf16-storage / f32-accumulate path (v6e/v7x recommendation): coarse check only.
    packed_bf16 = pack_params(params, storage_dtype=jnp.bfloat16)
    fwd_bf16 = jax.jit(lambda st, ac: inverse_net_forward(st, ac, packed_bf16, dt=1.0))
    out_bf16 = jax.block_until_ready(fwd_bf16(state, action))
    assert out_bf16.shape == (BATCH, ACTION_DIM)
    assert jnp.allclose(out_bf16, ref, atol=1e-1, rtol=1e-1)

    print("KERNEL_OK")
</pallas_src>

<mosaic_0001>
module attributes {stable_mosaic.version = 11 : i64} {
  func.func @_inverse_net_kernel(%arg0: i32, %arg1: memref<8x128xf32, #tpu.memory_space<vmem>>, %arg2: memref<2x128x128xf32, #tpu.memory_space<vmem>>, %arg3: memref<2x1x128xf32, #tpu.memory_space<vmem>>, %arg4: memref<2x128x128xf32, #tpu.memory_space<vmem>>, %arg5: memref<2x1x128xf32, #tpu.memory_space<vmem>>, %arg6: memref<8x128xf32, #tpu.memory_space<vmem>>) attributes {dimension_semantics = [#tpu.dimension_semantics<parallel>], iteration_bounds = array<i64: 1>, scalar_prefetch = 0 : i64, scratch_operands = 0 : i64, tpu.core_type = #tpu.core_type<tc>, window_params = [{transform_indices = @transform_0, window_bounds = array<i64: 8, 128>}, {pipeline_mode = #tpu.pipeline_mode<synchronous>, transform_indices = @transform_1, window_bounds = array<i64: 2, 128, 128>}, {pipeline_mode = #tpu.pipeline_mode<synchronous>, transform_indices = @transform_2, window_bounds = array<i64: 2, 1, 128>}, {pipeline_mode = #tpu.pipeline_mode<synchronous>, transform_indices = @transform_3, window_bounds = array<i64: 2, 128, 128>}, {pipeline_mode = #tpu.pipeline_mode<synchronous>, transform_indices = @transform_4, window_bounds = array<i64: 2, 1, 128>}, {transform_indices = @transform_5, window_bounds = array<i64: 8, 128>}]} {
    %c0 = arith.constant 0 : index
    %c0_0 = arith.constant 0 : index
    %0 = vector.load %arg1[%c0, %c0_0] : memref<8x128xf32, #tpu.memory_space<vmem>>, vector<8x128xf32>
    %1 = tpu.iota {dimensions = array<i32: 1>} : vector<8x128xi32>
    %c8_i32 = arith.constant 8 : i32
    %2 = vector.broadcast %c8_i32 : i32 to vector<8x128xi32>
    %3 = arith.cmpi slt, %1, %2 : vector<8x128xi32>
    %cst = arith.constant 0.000000e+00 : f32
    %4 = vector.broadcast %cst : f32 to vector<8x128xf32>
    %5 = arith.select %3, %0, %4 : vector<8x128xi1>, vector<8x128xf32>
    %cst_1 = arith.constant 0.000000e+00 : f32
    %6 = vector.broadcast %cst_1 : f32 to vector<8x128xf32>
    %7 = arith.select %3, %6, %0 : vector<8x128xi1>, vector<8x128xf32>
    %8 = arith.addf %5, %7 : vector<8x128xf32>
    %c0_2 = arith.constant 0 : index
    %c0_3 = arith.constant 0 : index
    %c0_4 = arith.constant 0 : index
    %9 = vector.load %arg2[%c0_2, %c0_3, %c0_4] : memref<2x128x128xf32, #tpu.memory_space<vmem>>, vector<1x128x128xf32>
    %10 = vector.shape_cast %9 : vector<1x128x128xf32> to vector<128x128xf32>
    %cst_5 = arith.constant dense<0.000000e+00> : vector<8x128xf32>
    %11 = tpu.matmul %8, %10, %cst_5 {dimension_numbers = #tpu.dot_dimension_numbers<[1], [0], [0], [1], [0, 0, 1, 1], [], []>} : vector<8x128xf32>, vector<128x128xf32>, vector<8x128xf32> -> vector<8x128xf32>
    %c0_6 = arith.constant 0 : index
    %c0_7 = arith.constant 0 : index
    %c0_8 = arith.constant 0 : index
    %12 = vector.load %arg3[%c0_6, %c0_7, %c0_8] : memref<2x1x128xf32, #tpu.memory_space<vmem>>, vector<1x1x128xf32>
    %13 = vector.shape_cast %12 : vector<1x1x128xf32> to vector<1x128xf32>
    %14 = vector.broadcast %13 : vector<1x128xf32> to vector<8x128xf32>
    %15 = arith.addf %11, %14 : vector<8x128xf32>
    %16 = math.tanh %15 : vector<8x128xf32>
    %c0_9 = arith.constant 0 : index
    %c0_10 = arith.constant 0 : index
    %c0_11 = arith.constant 0 : index
    %17 = vector.load %arg4[%c0_9, %c0_10, %c0_11] : memref<2x128x128xf32, #tpu.memory_space<vmem>>, vector<1x128x128xf32>
    %18 = vector.shape_cast %17 : vector<1x128x128xf32> to vector<128x128xf32>
    %cst_12 = arith.constant dense<0.000000e+00> : vector<8x128xf32>
    %19 = tpu.matmul %16, %18, %cst_12 {dimension_numbers = #tpu.dot_dimension_numbers<[1], [0], [0], [1], [0, 0, 1, 1], [], []>} : vector<8x128xf32>, vector<128x128xf32>, vector<8x128xf32> -> vector<8x128xf32>
    %c0_13 = arith.constant 0 : index
    %c0_14 = arith.constant 0 : index
    %c0_15 = arith.constant 0 : index
    %20 = vector.load %arg5[%c0_13, %c0_14, %c0_15] : memref<2x1x128xf32, #tpu.memory_space<vmem>>, vector<1x1x128xf32>
    %21 = vector.shape_cast %20 : vector<1x1x128xf32> to vector<1x128xf32>
    %22 = vector.broadcast %21 : vector<1x128xf32> to vector<8x128xf32>
    %23 = arith.addf %19, %22 : vector<8x128xf32>
    %24 = arith.addf %23, %7 : vector<8x128xf32>
    %c1 = arith.constant 1 : index
    %c0_16 = arith.constant 0 : index
    %c0_17 = arith.constant 0 : index
    %25 = vector.load %arg2[%c1, %c0_16, %c0_17] : memref<2x128x128xf32, #tpu.memory_space<vmem>>, vector<1x128x128xf32>
    %26 = vector.shape_cast %25 : vector<1x128x128xf32> to vector<128x128xf32>
    %cst_18 = arith.constant dense<0.000000e+00> : vector<8x128xf32>
    %27 = tpu.matmul %24, %26, %cst_18 {dimension_numbers = #tpu.dot_dimension_numbers<[1], [0], [0], [1], [0, 0, 1, 1], [], []>} : vector<8x128xf32>, vector<128x128xf32>, vector<8x128xf32> -> vector<8x128xf32>
    %c1_19 = arith.constant 1 : index
    %c0_20 = arith.constant 0 : index
    %c0_21 = arith.constant 0 : index
    %28 = vector.load %arg3[%c1_19, %c0_20, %c0_21] : memref<2x1x128xf32, #tpu.memory_space<vmem>>, vector<1x1x128xf32>
    %29 = vector.shape_cast %28 : vector<1x1x128xf32> to vector<1x128xf32>
    %30 = vector.broadcast %29 : vector<1x128xf32> to vector<8x128xf32>
    %31 = arith.addf %27, %30 : vector<8x128xf32>
    %32 = math.tanh %31 : vector<8x128xf32>
    %c1_22 = arith.constant 1 : index
    %c0_23 = arith.constant 0 : index
    %c0_24 = arith.constant 0 : index
    %33 = vector.load %arg4[%c1_22, %c0_23, %c0_24] : memref<2x128x128xf32, #tpu.memory_space<vmem>>, vector<1x128x128xf32>
    %34 = vector.shape_cast %33 : vector<1x128x128xf32> to vector<128x128xf32>
    %cst_25 = arith.constant dense<0.000000e+00> : vector<8x128xf32>
    %35 = tpu.matmul %32, %34, %cst_25 {dimension_numbers = #tpu.dot_dimension_numbers<[1], [0], [0], [1], [0, 0, 1, 1], [], []>} : vector<8x128xf32>, vector<128x128xf32>, vector<8x128xf32> -> vector<8x128xf32>
    %c1_26 = arith.constant 1 : index
    %c0_27 = arith.constant 0 : index
    %c0_28 = arith.constant 0 : index
    %36 = vector.load %arg5[%c1_26, %c0_27, %c0_28] : memref<2x1x128xf32, #tpu.memory_space<vmem>>, vector<1x1x128xf32>
    %37 = vector.shape_cast %36 : vector<1x1x128xf32> to vector<1x128xf32>
    %38 = vector.broadcast %37 : vector<1x128xf32> to vector<8x128xf32>
    %39 = arith.addf %35, %38 : vector<8x128xf32>
    %40 = arith.addf %5, %39 : vector<8x128xf32>
    %c0_29 = arith.constant 0 : index
    %c0_30 = arith.constant 0 : index
    %41 = vector.load %arg6[%c0_29, %c0_30] : memref<8x128xf32, #tpu.memory_space<vmem>>, vector<8x128xf32>
    tpu.vector_store %arg6[%c0_29, %c0_30], %40 {strides = array<i32>} : memref<8x128xf32, #tpu.memory_space<vmem>>, vector<8x128xf32>,
    return
  }
  func.func @transform_0(%arg0: i32) -> (i32, i32) {
    %c0_i32 = arith.constant 0 : i32
    %c0_i32_0 = arith.constant 0 : i32
    return %arg0, %c0_i32 : i32, i32
  }
  func.func @transform_1(%arg0: i32) -> (i32, i32, i32) {
    %c0_i32 = arith.constant 0 : i32
    %c0_i32_0 = arith.constant 0 : i32
    %c0_i32_1 = arith.constant 0 : i32
    %c0_i32_2 = arith.constant 0 : i32
    return %c0_i32, %c0_i32_0, %c0_i32_1 : i32, i32, i32
  }
  func.func @transform_2(%arg0: i32) -> (i32, i32, i32) {
    %c0_i32 = arith.constant 0 : i32
    %c0_i32_0 = arith.constant 0 : i32
    %c0_i32_1 = arith.constant 0 : i32
    %c0_i32_2 = arith.constant 0 : i32
    return %c0_i32, %c0_i32_0, %c0_i32_1 : i32, i32, i32
  }
  func.func @transform_3(%arg0: i32) -> (i32, i32, i32) {
    %c0_i32 = arith.constant 0 : i32
    %c0_i32_0 = arith.constant 0 : i32
    %c0_i32_1 = arith.constant 0 : i32
    %c0_i32_2 = arith.constant 0 : i32
    return %c0_i32, %c0_i32_0, %c0_i32_1 : i32, i32, i32
  }
  func.func @transform_4(%arg0: i32) -> (i32, i32, i32) {
    %c0_i32 = arith.constant 0 : i32
    %c0_i32_0 = arith.constant 0 : i32
    %c0_i32_1 = arith.constant 0 : i32
    %c0_i32_2 = arith.constant 0 : i32
    return %c0_i32, %c0_i32_0, %c0_i32_1 : i32, i32, i32
  }
  func.func @transform_5(%arg0: i32) -> (i32, i32) {
    %c0_i32 = arith.constant 0 : i32
    %c0_i32_0 = arith.constant 0 : i32
    return %arg0, %c0_i32 : i32, i32
  }
}

</mosaic_0001>

<llo_original>
// kernel: _lambda_.1
$region0: #{_lambda_.1}
  #allocation0 [shape = 'u32[]', space=smem, size = 0x4, offset = 0x4, fixed_abs, tag = 'smem constant byte address 0x4 - core index']
  #allocation1 [shape = 'u32[72,128]{1,0:T(1,128)}', space=vmem, size = 0x9000, scoped, tag = 'internal scratch']
  %s0 = inlined_call_operand.vmem [shape: f32[8,128], index: 0, kind: input, shape index: {}, may-alias: {0,5}]
  %s1 = inlined_call_operand.hbm [shape: f32[2,128,128], index: 1, kind: input, shape index: {}]
  %s2 = inlined_call_operand.vmem [shape: f32[2,1,128], index: 2, kind: input, shape index: {}]
  %s3 = inlined_call_operand.hbm [shape: f32[2,128,128], index: 3, kind: input, shape index: {}]
  %s4 = inlined_call_operand.vmem [shape: f32[2,1,128], index: 4, kind: input, shape index: {}]
  %s5 = inlined_call_operand.vmem [shape: f32[8,128], index: 5, kind: output, shape index: {}, may-alias: {0,5}]
  %s6 = sld [smem:[#allocation0]]
  $region38: #{_lambda_.1} parent=0
    _
  %s8 = ssub.s32 1, %s6
  %s9 = scalar_select 0, %s8, %s6
  $region1: #{_lambda_.1} parent=0
    #allocation2 [shape = 'u8[131072]{0}', space=vmem, size = 0x20000, scoped, tag = 'input window, operand 1, single buffered']
    #allocation3 [shape = 's32[1]{0}', space=sflag, size = 0x4, scoped, tag = 'scoped memory for _lambda_.1']
    #allocation4 [shape = 'u8[131072]{0}', space=vmem, size = 0x20000, scoped, tag = 'input window, operand 3, single buffered']
    #allocation5 [shape = 's32[1]{0}', space=sflag, size = 0x4, scoped, tag = 'scoped memory for _lambda_.1']
    %10 = vsyncpa [#allocation3], 0
    %11 = vsyncpa [#allocation5], 0
    // Predicated region
    $region2: #{_lambda_.1} parent=1 // pred_check
      _
    $region3: #{_lambda_.1} parent=1 // pred_check_branch
      %13 = sbr.rel (0) target = $region5
    $region4: #{_lambda_.1} parent=1 // pred_region
      _
    $region5: #{_lambda_.1} parent=1 // pred_fallthru
      _
    // Predicated region
    $region6: #{_lambda_.1} parent=1 // pred_check
      _
    $region7: #{_lambda_.1} parent=1 // pred_check_branch
      %15 = sbr.rel (0) target = $region9
    $region8: #{_lambda_.1} parent=1 // pred_region
      %17 = vsyncadd [#allocation3], 0
      %s18 = sshll.u32 %s1, 4
      %s19 = int_to_ptr.hbm [resolvable:$true] %s18
      %s20 = sshll.u32 [#allocation2], 4
      %s21 = int_to_ptr.vmem [resolvable:$true] %s20
      %26 = dma.hbm_to_vmem [thread:$0]  %s19, 4096, %s21, [#allocation3], 128, 128, 8
    $region9: #{_lambda_.1} parent=1 // pred_fallthru
      _
    // Predicated region
    $region10: #{_lambda_.1} parent=1 // pred_check
      _
    $region11: #{_lambda_.1} parent=1 // pred_check_branch
      %28 = sbr.rel (0) target = $region13
    $region12: #{_lambda_.1} parent=1 // pred_region
      _
    $region13: #{_lambda_.1} parent=1 // pred_fallthru
      _
    // Predicated region
    $region14: #{_lambda_.1} parent=1 // pred_check
      _
    $region15: #{_lambda_.1} parent=1 // pred_check_branch
      %30 = sbr.rel (0) target = $region17
    $region16: #{_lambda_.1} parent=1 // pred_region
      %32 = vsyncadd [#allocation5], 0
      %s33 = sshll.u32 %s3, 4
      %s34 = int_to_ptr.hbm [resolvable:$true] %s33
      %s35 = sshll.u32 [#allocation4], 4
      %s36 = int_to_ptr.vmem [resolvable:$true] %s35
      %41 = dma.hbm_to_vmem [thread:$0]  %s34, 4096, %s36, [#allocation5], 128, 128, 8
    $region17: #{_lambda_.1} parent=1 // pred_fallthru
      _
    // Predicated region
    $region18: #{_lambda_.1} parent=1 // pred_check
      _
    $region19: #{_lambda_.1} parent=1 // pred_check_branch
      %43 = sbr.rel (0) target = $region21
    $region20: #{_lambda_.1} parent=1 // pred_region
      _
    $region21: #{_lambda_.1} parent=1 // pred_fallthru
      _
    // Predicated region
    $region22: #{_lambda_.1} parent=1 // pred_check
      _
    $region23: #{_lambda_.1} parent=1 // pred_check_branch
      %45 = sbr.rel (0) target = $region25
    $region24: #{_lambda_.1} parent=1 // pred_region
      %47 = dma.done [#allocation3], 4096
    $region25: #{_lambda_.1} parent=1 // pred_fallthru
      _
    // Predicated region
    $region26: #{_lambda_.1} parent=1 // pred_check
      _
    $region27: #{_lambda_.1} parent=1 // pred_check_branch
      %49 = sbr.rel (0) target = $region29
    $region28: #{_lambda_.1} parent=1 // pred_region
      %51 = dma.done [#allocation5], 4096
    $region29: #{_lambda_.1} parent=1 // pred_fallthru
      _
    %v52 = vld [vmem:[%s0] sm:$0xff]
    %v53 = vlaneseq
    %v54 = vand.u32 %v53, 127
    %vm55 = vcmp.lt.s32.totalorder %v54, 8
    %v56 = vsel %vm55, %v52, 0.0
    %v57 = vsel %vm55, 0.0, %v52
    %v58 = vadd.f32 %v56, %v57
    %v59 = vld [vmem:[#allocation2] sm:$0xff]
    %v60 = vld [vmem:[#allocation2 + $0x8] sm:$0xff]
    %v61 = vld [vmem:[#allocation2 + $0x10] sm:$0xff]
    %v62 = vld [vmem:[#allocation2 + $0x18] sm:$0xff]
    %v63 = vld [vmem:[#allocation2 + $0x20] sm:$0xff]
    %v64 = vld [vmem:[#allocation2 + $0x28] sm:$0xff]
    %v65 = vld [vmem:[#allocation2 + $0x30] sm:$0xff]
    %v66 = vld [vmem:[#allocation2 + $0x38] sm:$0xff]
    %v67 = vld [vmem:[#allocation2 + $0x40] sm:$0xff]
    %v68 = vld [vmem:[#allocation2 + $0x48] sm:$0xff]
    %v69 = vld [vmem:[#allocation2 + $0x50] sm:$0xff]
    %v70 = vld [vmem:[#allocation2 + $0x58] sm:$0xff]
    %v71 = vld [vmem:[#allocation2 + $0x60] sm:$0xff]
    %v72 = vld [vmem:[#allocation2 + $0x68] sm:$0xff]
    %v73 = vld [vmem:[#allocation2 + $0x70] sm:$0xff]
    %v74 = vld [vmem:[#allocation2 + $0x78] sm:$0xff]
    %v75 = vld [vmem:[%s2] sm:$0x1]
    %v77 = vperm.slane %v75, 0
    %79 = vmatpush.msra.mxu0 %v74
    %80 = vmatpush.msra.mxu0 %v73
    %81 = vmatpush.msra.mxu0 %v72
    %82 = vmatpush.msra.mxu0 %v71
    %83 = vmatpush.msra.mxu0 %v70
    %84 = vmatpush.msra.mxu0 %v69
    %85 = vmatpush.msra.mxu0 %v68
    %86 = vmatpush.msra.mxu0 %v67
    %87 = vmatpush.msra.mxu0 %v66
    %88 = vmatpush.msra.mxu0 %v65
    %89 = vmatpush.msra.mxu0 %v64
    %90 = vmatpush.msra.mxu0 %v63
    %91 = vmatpush.msra.mxu0 %v62
    %92 = vmatpush.msra.mxu0 %v61
    %93 = vmatpush.msra.mxu0 %v60
    %94 = vmatpush.msra.mxu0 %v59
    %95 = vmatmul.f32.gmra.mxu0 %v58
    %v96 = vpop.f32.mrf.mxu0
    %v97 = vadd.f32 %v77, %v96
    %98 = vdwg.mxu0
    %v99 = vtanh.pop %v97
    %v100 = vld [vmem:[#allocation4] sm:$0xff]
    %v101 = vld [vmem:[#allocation4 + $0x8] sm:$0xff]
    %v102 = vld [vmem:[#allocation4 + $0x10] sm:$0xff]
    %v103 = vld [vmem:[#allocation4 + $0x18] sm:$0xff]
    %v104 = vld [vmem:[#allocation4 + $0x20] sm:$0xff]
    %v105 = vld [vmem:[#allocation4 + $0x28] sm:$0xff]
    %v106 = vld [vmem:[#allocation4 + $0x30] sm:$0xff]
    %v107 = vld [vmem:[#allocation4 + $0x38] sm:$0xff]
    %v108 = vld [vmem:[#allocation4 + $0x40] sm:$0xff]
    %v109 = vld [vmem:[#allocation4 + $0x48] sm:$0xff]
    %v110 = vld [vmem:[#allocation4 + $0x50] sm:$0xff]
    %v111 = vld [vmem:[#allocation4 + $0x58] sm:$0xff]
    %v112 = vld [vmem:[#allocation4 + $0x60] sm:$0xff]
    %v113 = vld [vmem:[#allocation4 + $0x68] sm:$0xff]
    %v114 = vld [vmem:[#allocation4 + $0x70] sm:$0xff]
    %v115 = vld [vmem:[#allocation4 + $0x78] sm:$0xff]
    %v116 = vld [vmem:[%s4] sm:$0x1]
    %v118 = vperm.slane %v116, 0
    %120 = vmatpush.msra.mxu0 %v115
    %121 = vmatpush.msra.mxu0 %v114
    %122 = vmatpush.msra.mxu0 %v113
    %123 = vmatpush.msra.mxu0 %v112
    %124 = vmatpush.msra.mxu0 %v111
    %125 = vmatpush.msra.mxu0 %v110
    %126 = vmatpush.msra.mxu0 %v109
    %127 = vmatpush.msra.mxu0 %v108
    %128 = vmatpush.msra.mxu0 %v107
    %129 = vmatpush.msra.mxu0 %v106
    %130 = vmatpush.msra.mxu0 %v105
    %131 = vmatpush.msra.mxu0 %v104
    %132 = vmatpush.msra.mxu0 %v103
    %133 = vmatpush.msra.mxu0 %v102
    %134 = vmatpush.msra.mxu0 %v101
    %135 = vmatpush.msra.mxu0 %v100
    %136 = vmatmul.f32.gmra.mxu0 %v99
    %v137 = vpop.f32.mrf.mxu0
    %v138 = vadd.f32 %v118, %v137
    %139 = vdwg.mxu0
    %v140 = vadd.f32 %v138, %v57
    %s141 = scalar_lea.vmem [#allocation2], 128
    %v142 = vld [vmem:[%s141] sm:$0xff]
    %v143 = vld [vmem:[%s141 + $0x8] sm:$0xff]
    %v144 = vld [vmem:[%s141 + $0x10] sm:$0xff]
    %v145 = vld [vmem:[%s141 + $0x18] sm:$0xff]
    %v146 = vld [vmem:[%s141 + $0x20] sm:$0xff]
    %v147 = vld [vmem:[%s141 + $0x28] sm:$0xff]
    %v148 = vld [vmem:[%s141 + $0x30] sm:$0xff]
    %v149 = vld [vmem:[%s141 + $0x38] sm:$0xff]
    %v150 = vld [vmem:[%s141 + $0x40] sm:$0xff]
    %v151 = vld [vmem:[%s141 + $0x48] sm:$0xff]
    %v152 = vld [vmem:[%s141 + $0x50] sm:$0xff]
    %v153 = vld [vmem:[%s141 + $0x58] sm:$0xff]
    %v154 = vld [vmem:[%s141 + $0x60] sm:$0xff]
    %v155 = vld [vmem:[%s141 + $0x68] sm:$0xff]
    %v156 = vld [vmem:[%s141 + $0x70] sm:$0xff]
    %v157 = vld [vmem:[%s141 + $0x78] sm:$0xff]
    %s158 = scalar_lea.vmem %s2, 1
    %v159 = vld [vmem:[%s158] sm:$0x1]
    %v161 = vperm.slane %v159, 0
    %163 = vmatpush.msra.mxu0 %v157
    %164 = vmatpush.msra.mxu0 %v156
    %165 = vmatpush.msra.mxu0 %v155
    %166 = vmatpush.msra.mxu0 %v154
    %167 = vmatpush.msra.mxu0 %v153
    %168 = vmatpush.msra.mxu0 %v152
    %169 = vmatpush.msra.mxu0 %v151
    %170 = vmatpush.msra.mxu0 %v150
    %171 = vmatpush.msra.mxu0 %v149
    %172 = vmatpush.msra.mxu0 %v148
    %173 = vmatpush.msra.mxu0 %v147
    %174 = vmatpush.msra.mxu0 %v146
    %175 = vmatpush.msra.mxu0 %v145
    %176 = vmatpush.msra.mxu0 %v144
    %177 = vmatpush.msra.mxu0 %v143
    %178 = vmatpush.msra.mxu0 %v142
    %179 = vmatmul.f32.gmra.mxu0 %v140
    %v180 = vpop.f32.mrf.mxu0
    %v181 = vadd.f32 %v161, %v180
    %182 = vdwg.mxu0
    %v183 = vtanh.pop %v181
    %s184 = scalar_lea.vmem [#allocation4], 128
    %v185 = vld [vmem:[%s184] sm:$0xff]
    %v186 = vld [vmem:[%s184 + $0x8] sm:$0xff]
    %v187 = vld [vmem:[%s184 + $0x10] sm:$0xff]
    %v188 = vld [vmem:[%s184 + $0x18] sm:$0xff]
    %v189 = vld [vmem:[%s184 + $0x20] sm:$0xff]
    %v190 = vld [vmem:[%s184 + $0x28] sm:$0xff]
    %v191 = vld [vmem:[%s184 + $0x30] sm:$0xff]
    %v192 = vld [vmem:[%s184 + $0x38] sm:$0xff]
    %v193 = vld [vmem:[%s184 + $0x40] sm:$0xff]
    %v194 = vld [vmem:[%s184 + $0x48] sm:$0xff]
    %v195 = vld [vmem:[%s184 + $0x50] sm:$0xff]
    %v196 = vld [vmem:[%s184 + $0x58] sm:$0xff]
    %v197 = vld [vmem:[%s184 + $0x60] sm:$0xff]
    %v198 = vld [vmem:[%s184 + $0x68] sm:$0xff]
    %v199 = vld [vmem:[%s184 + $0x70] sm:$0xff]
    %v200 = vld [vmem:[%s184 + $0x78] sm:$0xff]
    %s201 = scalar_lea.vmem %s4, 1
    %v202 = vld [vmem:[%s201] sm:$0x1]
    %v204 = vperm.slane %v202, 0
    %206 = vmatpush.msra.mxu0 %v200
    %207 = vmatpush.msra.mxu0 %v199
    %208 = vmatpush.msra.mxu0 %v198
    %209 = vmatpush.msra.mxu0 %v197
    %210 = vmatpush.msra.mxu0 %v196
    %211 = vmatpush.msra.mxu0 %v195
    %212 = vmatpush.msra.mxu0 %v194
    %213 = vmatpush.msra.mxu0 %v193
    %214 = vmatpush.msra.mxu0 %v192
    %215 = vmatpush.msra.mxu0 %v191
    %216 = vmatpush.msra.mxu0 %v190
    %217 = vmatpush.msra.mxu0 %v189
    %218 = vmatpush.msra.mxu0 %v188
    %219 = vmatpush.msra.mxu0 %v187
    %220 = vmatpush.msra.mxu0 %v186
    %221 = vmatpush.msra.mxu0 %v185
    %222 = vmatmul.f32.gmra.mxu0 %v183
    %v223 = vpop.f32.mrf.mxu0
    %v224 = vadd.f32 %v204, %v223
    %225 = vdwg.mxu0
    %v226 = vadd.f32 %v56, %v224
    %227 = vst [vmem:[%s5] sm:$0xff] %v226
    // Predicated region
    $region30: #{_lambda_.1} parent=1 // pred_check
      _
    $region31: #{_lambda_.1} parent=1 // pred_check_branch
      %229 = sbr.rel (0) target = $region33
    $region32: #{_lambda_.1} parent=1 // pred_region
      _
    $region33: #{_lambda_.1} parent=1 // pred_fallthru
      _
    // Predicated region
    $region34: #{_lambda_.1} parent=1 // pred_check
      _
    $region35: #{_lambda_.1} parent=1 // pred_check_branch
      %231 = sbr.rel (0) target = $region37
    $region36: #{_lambda_.1} parent=1 // pred_region
      _
    $region37: #{_lambda_.1} parent=1 // pred_fallthru
      _
    %232 = vsyncpa [#allocation3], 1
    %233 = vsyncpa [#allocation5], 1

</llo_original>
